<compile_context>
chip_gen: v7x
topology: tpu7x:2x2x1
jax: 0.10.0
libtpu: 0.0.40
codegen_flags: <defaults>
</compile_context>

<pallas_src>
import jax
import jax.numpy as jnp
from jax.experimental import pallas as pl
from jax.experimental.pallas import tpu as pltpu

_MIB = 1024 * 1024


def _round_up(x, m):
    return ((x + m - 1) // m) * m


def _cdiv(a, b):
    return -(-a // b)


def _vmem_budget_bytes():
    """Per-generation working-set budget (v7x: 64 MiB/TC, v5e/v6e: 128 MiB)."""
    try:
        cap = pltpu.get_tpu_info().vmem_capacity_bytes
    except Exception:  # conservative default == v7x per-TC capacity
        cap = 64 * _MIB
    return int(min(48 * _MIB, max(16 * _MIB, cap // 2 - 8 * _MIB)))


def _linear_kernel(x_ref, w_ref, b_ref, o_ref, acc_ref):
    # x_ref: (tb, tk), w_ref: (tk, tn), b_ref: (1, tn),
    # o_ref: (tb, tn), acc_ref: (tb, tn) f32 scratch.
    k = pl.program_id(2)

    @pl.when(k == 0)
    def _():
        acc_ref[...] = jnp.zeros_like(acc_ref)

    acc_ref[...] += jnp.dot(x_ref[...], w_ref[...],
                            preferred_element_type=jnp.float32)

    @pl.when(k == pl.num_programs(2) - 1)
    def _():
        o_ref[...] = (acc_ref[...]
                      + b_ref[...].astype(jnp.float32)).astype(o_ref.dtype)


def prepare_linear_probe_params(w, b):
    """One-time weight prep, hoisted out of the per-call path.

    w: (O, D) torch nn.Linear layout, b: (O,).
    """
    O, D = w.shape
    assert b.shape == (O,)
    w = jnp.asarray(w)
    b = jnp.asarray(b)
    if O <= 256:
        # Small-O path (the probe case): keep the true output width; a block
        # whose last dim equals the full array dim is legal, and we avoid
        # writing 128-wide zero padding back to HBM.
        o_eff = O
        w_t = w.T                                      # (D, O)
        b_p = b.reshape(1, O)
    else:
        # Wide-O path: lane-dense, 128-multiple tiles.
        o_eff = _round_up(O, 128)
        w_t = jnp.pad(w.T, ((0, 0), (0, o_eff - O)))   # (D, O_eff)
        b_p = jnp.pad(b, (0, o_eff - O)).reshape(1, o_eff)
    return {"w_t": w_t, "b": b_p, "in_dim": D, "out_dim": O, "out_eff": o_eff}


def linear_probe_forward(x, params, *, force_kernel=False):
    """y = x @ W.T + b  (torch.nn.Linear forward) via a Pallas TPU kernel."""
    B, D = x.shape
    assert D == params["in_dim"]
    w_t, b_p = params["w_t"], params["b"]
    O, o_eff = params["out_dim"], params["out_eff"]
    out_dtype = x.dtype

    def xla_fallback():
        y = jnp.dot(x, w_t) + b_p
        return y[:, :O] if o_eff != O else y

    # Tiny problems: per-grid-step (~0.35us) + launch overhead beat any kernel
    # win; let XLA fuse the dot.  The demo forces the kernel path.
    if not force_kernel and (B * D * o_eff) < (1 << 18):
        return xla_fallback()

    budget = _vmem_budget_bytes()

    # ---- Output tile -------------------------------------------------------
    if o_eff <= 256:
        tn = o_eff                        # full-dim block (probe: tn == 1)
    else:
        tn = 256 if o_eff % 256 == 0 else 128
    no = o_eff // tn

    # ---- K (input_dim) tile: bound the double-buffered weight slab ---------
    if 2 * D * tn * 4 <= budget // 3:
        tk = D                            # no K tiling needed
    else:
        tk = None
        for cand in (2048, 1024, 512, 256, 128):
            if D % cand == 0 and 2 * cand * tn * 4 <= budget // 3:
                tk = cand
                break
        if tk is None:
            # TODO(synk): huge D not divisible by a 128-multiple tile would
            # need a zero-padded K axis prepared alongside the weights.
            return xla_fallback()
    nk = D // tk

    # ---- Batch tile: largest multiple of 8 that fits the VMEM budget -------
    def footprint(tb_):
        return (2 * tb_ * tk * 4          # x slab, double buffered
                + 2 * tk * tn * 4         # weight slab, double buffered
                + 2 * tb_ * tn * 4        # out slab, double buffered
                + tb_ * tn * 4            # f32 accumulator scratch
                + 2 * tn * 4)             # bias

    tb = min(2048 if budget >= 40 * _MIB else 512, _round_up(B, 8))
    tb = max(8, _round_up(tb, 8))
    while tb > 8 and footprint(tb) > budget:
        tb = max(8, _round_up(tb // 2, 8))
    if footprint(tb) > budget:
        return xla_fallback()             # even tb=8 does not fit -> XLA dot

    # v7x has two TensorCores: when the out axis has a single tile, make sure
    # the (parallel) batch axis has at least two steps to split across them.
    if no == 1 and _cdiv(B, tb) == 1 and B > 8:
        tb = max(8, _round_up(_cdiv(B, 2), 8))
    nb = _cdiv(B, tb)                     # ragged last tile: stores are masked

    cost = pl.CostEstimate(
        flops=2 * B * D * O,
        transcendentals=0,
        bytes_accessed=(B * D * 4            # x read once
                        + nb * D * o_eff * 4  # W re-streamed per batch tile
                        + o_eff * 4
                        + B * o_eff * 4),
    )

    y = pl.pallas_call(
        _linear_kernel,
        out_shape=jax.ShapeDtypeStruct((B, o_eff), out_dtype),
        grid_spec=pltpu.PrefetchScalarGridSpec(
            num_scalar_prefetch=0,
            grid=(nb, no, nk),
            in_specs=[
                pl.BlockSpec((tb, tk), lambda i, j, k: (i, k)),   # x tile
                pl.BlockSpec((tk, tn), lambda i, j, k: (k, j)),   # W^T tile
                pl.BlockSpec((1, tn), lambda i, j, k: (0, j)),    # bias tile
            ],
            out_specs=pl.BlockSpec((tb, tn), lambda i, j, k: (i, j)),
            scratch_shapes=[pltpu.VMEM((tb, tn), jnp.float32)],
        ),
        compiler_params=pltpu.CompilerParams(
            dimension_semantics=("parallel", "parallel", "arbitrary"),
            vmem_limit_bytes=int(max(footprint(tb) + 2 * _MIB, 16 * _MIB)),
        ),
        cost_estimate=cost,
    )(x, w_t, b_p)

    return y[:, :O] if o_eff != O else y


if __name__ == "__main__":
    # Small shapes consistent with LinearProbe(input_dim, output_dim=1).
    B, D, O = 8, 512, 1

    key = jax.random.PRNGKey(0)
    kx, kw, kb = jax.random.split(key, 3)

    # Deterministic init mimicking torch.nn.Linear: U(-1/sqrt(D), 1/sqrt(D)).
    bound = 1.0 / (D ** 0.5)
    x = jax.random.normal(kx, (B, D), dtype=jnp.float32)
    w = jax.random.uniform(kw, (O, D), minval=-bound, maxval=bound,
                           dtype=jnp.float32)        # torch layout (out, in)
    b = jax.random.uniform(kb, (O,), minval=-bound, maxval=bound,
                           dtype=jnp.float32)

    params = prepare_linear_probe_params(w, b)       # one-time weight prep
    # Force the Pallas path even at demo size (dispatcher would otherwise pick
    # the fused XLA dot for a problem this small).
    y = linear_probe_forward(x, params, force_kernel=True)
    y = jax.block_until_ready(y)

    # Reference check (plain JAX).  Tolerance allows for the reference XLA dot
    # and the in-kernel MXU matmul choosing different f32 contraction
    # precisions on TPU.
    y_ref = x @ w.T + b
    assert y.shape == (B, O)
    assert jnp.allclose(y, y_ref, atol=1e-2, rtol=1e-2), "mismatch vs reference"

    print("KERNEL_OK")
</pallas_src>

<mosaic_0001>
module attributes {stable_mosaic.version = 11 : i64} {
  func.func @_linear_kernel(%arg0: i32, %arg1: i32, %arg2: i32, %arg3: memref<8x512xf32, #tpu.memory_space<vmem>>, %arg4: memref<512x1xf32, #tpu.memory_space<vmem>>, %arg5: memref<1x1xf32, #tpu.memory_space<vmem>>, %arg6: memref<8x1xf32, #tpu.memory_space<vmem>>, %arg7: memref<8x1xf32, #tpu.memory_space<vmem>>) attributes {dimension_semantics = [#tpu.dimension_semantics<parallel>, #tpu.dimension_semantics<parallel>, #tpu.dimension_semantics<arbitrary>], iteration_bounds = array<i64: 1, 1, 1>, scalar_prefetch = 0 : i64, scratch_operands = 1 : i64, tpu.core_type = #tpu.core_type<tc>, window_params = [{transform_indices = @transform_0, window_bounds = array<i64: 8, 512>}, {transform_indices = @transform_1, window_bounds = array<i64: 512, 1>}, {transform_indices = @transform_2, window_bounds = array<i64: 1, 1>}, {transform_indices = @transform_3, window_bounds = array<i64: 8, 1>}]} {
    %c0_i32 = arith.constant 0 : i32
    %0 = arith.cmpi eq, %arg2, %c0_i32 : i32
    %1 = arith.extui %0 : i1 to i32
    %c0_i32_0 = arith.constant 0 : i32
    %2 = arith.cmpi ne, %1, %c0_i32_0 : i32
    scf.if %2 {
      %cst_10 = arith.constant 0.000000e+00 : f32
      %12 = vector.broadcast %cst_10 : f32 to vector<8x1xf32>
      %c0_11 = arith.constant 0 : index
      %c0_12 = arith.constant 0 : index
      %13 = vector.load %arg7[%c0_11, %c0_12] : memref<8x1xf32, #tpu.memory_space<vmem>>, vector<8x1xf32>
      tpu.vector_store %arg7[%c0_11, %c0_12], %12 {strides = array<i32>} : memref<8x1xf32, #tpu.memory_space<vmem>>, vector<8x1xf32>,
    } else {
    }
    %c0 = arith.constant 0 : index
    %c0_1 = arith.constant 0 : index
    %3 = vector.load %arg7[%c0, %c0_1] : memref<8x1xf32, #tpu.memory_space<vmem>>, vector<8x1xf32>
    %c0_2 = arith.constant 0 : index
    %c0_3 = arith.constant 0 : index
    %4 = vector.load %arg3[%c0_2, %c0_3] : memref<8x512xf32, #tpu.memory_space<vmem>>, vector<8x512xf32>
    %c0_4 = arith.constant 0 : index
    %c0_5 = arith.constant 0 : index
    %5 = vector.load %arg4[%c0_4, %c0_5] : memref<512x1xf32, #tpu.memory_space<vmem>>, vector<512x1xf32>
    %cst = arith.constant dense<0.000000e+00> : vector<8x1xf32>
    %6 = tpu.matmul %4, %5, %cst {dimension_numbers = #tpu.dot_dimension_numbers<[1], [0], [0], [1], [0, 0, 1, 1], [], []>} : vector<8x512xf32>, vector<512x1xf32>, vector<8x1xf32> -> vector<8x1xf32>
    %7 = arith.addf %3, %6 : vector<8x1xf32>
    %c0_6 = arith.constant 0 : index
    %c0_7 = arith.constant 0 : index
    %8 = vector.load %arg7[%c0_6, %c0_7] : memref<8x1xf32, #tpu.memory_space<vmem>>, vector<8x1xf32>
    tpu.vector_store %arg7[%c0_6, %c0_7], %7 {strides = array<i32>} : memref<8x1xf32, #tpu.memory_space<vmem>>, vector<8x1xf32>,
    %c0_i32_8 = arith.constant 0 : i32
    %9 = arith.cmpi eq, %arg2, %c0_i32_8 : i32
    %10 = arith.extui %9 : i1 to i32
    %c0_i32_9 = arith.constant 0 : i32
    %11 = arith.cmpi ne, %10, %c0_i32_9 : i32
    scf.if %11 {
      %c0_10 = arith.constant 0 : index
      %c0_11 = arith.constant 0 : index
      %12 = vector.load %arg7[%c0_10, %c0_11] : memref<8x1xf32, #tpu.memory_space<vmem>>, vector<8x1xf32>
      %c0_12 = arith.constant 0 : index
      %c0_13 = arith.constant 0 : index
      %13 = vector.load %arg5[%c0_12, %c0_13] : memref<1x1xf32, #tpu.memory_space<vmem>>, vector<1x1xf32>
      %14 = vector.broadcast %13 : vector<1x1xf32> to vector<8x1xf32>
      %15 = arith.addf %12, %14 : vector<8x1xf32>
      %c0_14 = arith.constant 0 : index
      %c0_15 = arith.constant 0 : index
      %16 = vector.load %arg6[%c0_14, %c0_15] : memref<8x1xf32, #tpu.memory_space<vmem>>, vector<8x1xf32>
      tpu.vector_store %arg6[%c0_14, %c0_15], %15 {strides = array<i32>} : memref<8x1xf32, #tpu.memory_space<vmem>>, vector<8x1xf32>,
    } else {
    }
    return
  }
  func.func @transform_0(%arg0: i32, %arg1: i32, %arg2: i32) -> (i32, i32) {
    %c0_i32 = arith.constant 0 : i32
    return %arg0, %arg2 : i32, i32
  }
  func.func @transform_1(%arg0: i32, %arg1: i32, %arg2: i32) -> (i32, i32) {
    %c0_i32 = arith.constant 0 : i32
    return %arg2, %arg1 : i32, i32
  }
  func.func @transform_2(%arg0: i32, %arg1: i32, %arg2: i32) -> (i32, i32) {
    %c0_i32 = arith.constant 0 : i32
    %c0_i32_0 = arith.constant 0 : i32
    return %c0_i32, %arg1 : i32, i32
  }
  func.func @transform_3(%arg0: i32, %arg1: i32, %arg2: i32) -> (i32, i32) {
    %c0_i32 = arith.constant 0 : i32
    return %arg0, %arg1 : i32, i32
  }
}

</mosaic_0001>

<llo_original>
// kernel: tpu_custom_call.1
$region0: #{tpu_custom_call.1}
  #allocation0 [shape = 'u32[]', space=smem, size = 0x4, offset = 0x4, fixed_abs, tag = 'smem constant byte address 0x4 - core index']
  #allocation1 [shape = 'u32[144,128]{1,0:T(1,128)}', space=vmem, size = 0x12000, scoped, tag = 'internal scratch']
  #allocation2 [shape = 'f32[8,1]{1,0:T(8,128)}', space=vmem, size = 0x1000, scoped, tag = 'scratch operand']
  #allocation3 [shape = 'f32[1,1]{1,0:T(1,128)S(1)}', space=vmem, size = 0x200, scoped, tag = 'scoped memory for tpu_custom_call.1']
  %s0 = inlined_call_operand.vmem [shape: f32[8,512], index: 0, kind: input, shape index: {}]
  %s1 = inlined_call_operand.vmem [shape: f32[512,1], index: 1, kind: input, shape index: {}]
  %s2 = inlined_call_operand.<no memory space> [shape: f32[1,1], index: 2, kind: input, shape index: {}]
  %s3 = inlined_call_operand.vmem [shape: f32[8,1], index: 3, kind: output, shape index: {}]
  %s4 = sld [smem:[#allocation0]]
  $region30: #{tpu_custom_call.1} parent=0
    _
  %s6 = ssub.s32 1, %s4
  %s7 = scalar_select 0, %s6, %s4
  %v8 = vstv %s2
  %9 = vst [vmem:[#allocation3] sm:$0x1] %v8
  // Predicated region
  $region2: #{tpu_custom_call.1} parent=0 // pred_check
    _
  $region3: #{tpu_custom_call.1} parent=0 // pred_check_branch
    %11 = sbr.rel (0) target = $region5
  $region4: #{tpu_custom_call.1} parent=0 // pred_region
    _
  $region5: #{tpu_custom_call.1} parent=0 // pred_fallthru
    _
  // Predicated region
  $region6: #{tpu_custom_call.1} parent=0 // pred_check
    _
  $region7: #{tpu_custom_call.1} parent=0 // pred_check_branch
    %13 = sbr.rel (0) target = $region9
  $region8: #{tpu_custom_call.1} parent=0 // pred_region
    _
  $region9: #{tpu_custom_call.1} parent=0 // pred_fallthru
    _
  // Predicated region
  $region10: #{tpu_custom_call.1} parent=0 // pred_check
    _
  $region11: #{tpu_custom_call.1} parent=0 // pred_check_branch
    %15 = sbr.rel (0) target = $region13
  $region12: #{tpu_custom_call.1} parent=0 // pred_region
    _
  $region13: #{tpu_custom_call.1} parent=0 // pred_fallthru
    _
  %p16 = scmp.eq.s32.totalorder 0, 0
  // Predicated region
  $region14: #{tpu_custom_call.1} parent=0 // pred_check
    %p17 = pneg %p16
  $region15: #{tpu_custom_call.1} parent=0 // pred_check_branch
    %19 = sbr.rel (%p17) target = $region17
  $region16: #{tpu_custom_call.1} parent=0 // pred_region
    %vm20 = vcmask 7168
    %21 = vst.msk [vmem:[#allocation2] sm:$0xff] %vm20, 0.0
  $region17: #{tpu_custom_call.1} parent=0 // pred_fallthru
    _
  %v22 = vld [vmem:[#allocation2] sm:$0xff]
  %v23 = vld [vmem:[%s0] sm:$0xff]
  %v24 = vld [vmem:[%s0 + $0x8] sm:$0xff]
  %v25 = vld [vmem:[%s0 + $0x10] sm:$0xff]
  %v26 = vld [vmem:[%s0 + $0x18] sm:$0xff]
  %v27 = vld [vmem:[%s1] sm:$0xff]
  %v28 = vld [vmem:[%s1 + $0x8] sm:$0xff]
  %v29 = vld [vmem:[%s1 + $0x10] sm:$0xff]
  %v30 = vld [vmem:[%s1 + $0x18] sm:$0xff]
  %v31 = vld [vmem:[%s1 + $0x20] sm:$0xff]
  %v32 = vld [vmem:[%s1 + $0x28] sm:$0xff]
  %v33 = vld [vmem:[%s1 + $0x30] sm:$0xff]
  %v34 = vld [vmem:[%s1 + $0x38] sm:$0xff]
  %v35 = vld [vmem:[%s1 + $0x40] sm:$0xff]
  %v36 = vld [vmem:[%s1 + $0x48] sm:$0xff]
  %v37 = vld [vmem:[%s1 + $0x50] sm:$0xff]
  %v38 = vld [vmem:[%s1 + $0x58] sm:$0xff]
  %v39 = vld [vmem:[%s1 + $0x60] sm:$0xff]
  %v40 = vld [vmem:[%s1 + $0x68] sm:$0xff]
  %v41 = vld [vmem:[%s1 + $0x70] sm:$0xff]
  %v42 = vld [vmem:[%s1 + $0x78] sm:$0xff]
  %v43 = vld [vmem:[%s1 + $0x80] sm:$0xff]
  %v44 = vld [vmem:[%s1 + $0x88] sm:$0xff]
  %v45 = vld [vmem:[%s1 + $0x90] sm:$0xff]
  %v46 = vld [vmem:[%s1 + $0x98] sm:$0xff]
  %v47 = vld [vmem:[%s1 + $0xa0] sm:$0xff]
  %v48 = vld [vmem:[%s1 + $0xa8] sm:$0xff]
  %v49 = vld [vmem:[%s1 + $0xb0] sm:$0xff]
  %v50 = vld [vmem:[%s1 + $0xb8] sm:$0xff]
  %v51 = vld [vmem:[%s1 + $0xc0] sm:$0xff]
  %v52 = vld [vmem:[%s1 + $0xc8] sm:$0xff]
  %v53 = vld [vmem:[%s1 + $0xd0] sm:$0xff]
  %v54 = vld [vmem:[%s1 + $0xd8] sm:$0xff]
  %v55 = vld [vmem:[%s1 + $0xe0] sm:$0xff]
  %v56 = vld [vmem:[%s1 + $0xe8] sm:$0xff]
  %v57 = vld [vmem:[%s1 + $0xf0] sm:$0xff]
  %v58 = vld [vmem:[%s1 + $0xf8] sm:$0xff]
  %v59 = vld [vmem:[%s1 + $0x100] sm:$0xff]
  %v60 = vld [vmem:[%s1 + $0x108] sm:$0xff]
  %v61 = vld [vmem:[%s1 + $0x110] sm:$0xff]
  %v62 = vld [vmem:[%s1 + $0x118] sm:$0xff]
  %v63 = vld [vmem:[%s1 + $0x120] sm:$0xff]
  %v64 = vld [vmem:[%s1 + $0x128] sm:$0xff]
  %v65 = vld [vmem:[%s1 + $0x130] sm:$0xff]
  %v66 = vld [vmem:[%s1 + $0x138] sm:$0xff]
  %v67 = vld [vmem:[%s1 + $0x140] sm:$0xff]
  %v68 = vld [vmem:[%s1 + $0x148] sm:$0xff]
  %v69 = vld [vmem:[%s1 + $0x150] sm:$0xff]
  %v70 = vld [vmem:[%s1 + $0x158] sm:$0xff]
  %v71 = vld [vmem:[%s1 + $0x160] sm:$0xff]
  %v72 = vld [vmem:[%s1 + $0x168] sm:$0xff]
  %v73 = vld [vmem:[%s1 + $0x170] sm:$0xff]
  %v74 = vld [vmem:[%s1 + $0x178] sm:$0xff]
  %v75 = vld [vmem:[%s1 + $0x180] sm:$0xff]
  %v76 = vld [vmem:[%s1 + $0x188] sm:$0xff]
  %v77 = vld [vmem:[%s1 + $0x190] sm:$0xff]
  %v78 = vld [vmem:[%s1 + $0x198] sm:$0xff]
  %v79 = vld [vmem:[%s1 + $0x1a0] sm:$0xff]
  %v80 = vld [vmem:[%s1 + $0x1a8] sm:$0xff]
  %v81 = vld [vmem:[%s1 + $0x1b0] sm:$0xff]
  %v82 = vld [vmem:[%s1 + $0x1b8] sm:$0xff]
  %v83 = vld [vmem:[%s1 + $0x1c0] sm:$0xff]
  %v84 = vld [vmem:[%s1 + $0x1c8] sm:$0xff]
  %v85 = vld [vmem:[%s1 + $0x1d0] sm:$0xff]
  %v86 = vld [vmem:[%s1 + $0x1d8] sm:$0xff]
  %v87 = vld [vmem:[%s1 + $0x1e0] sm:$0xff]
  %v88 = vld [vmem:[%s1 + $0x1e8] sm:$0xff]
  %v89 = vld [vmem:[%s1 + $0x1f0] sm:$0xff]
  %v90 = vld [vmem:[%s1 + $0x1f8] sm:$0xff]
  %91 = vmatprep.subr.mxu0 0.0
  %92 = vmatpush1.msra.mxu0 %v27
  %93 = vmatprep.subr.mxu0 0.0
  %94 = vmatpush1.msra.mxu0 %v28
  %95 = vmatprep.subr.mxu0 0.0
  %96 = vmatpush1.msra.mxu0 %v29
  %97 = vmatprep.subr.mxu0 0.0
  %98 = vmatpush1.msra.mxu0 %v30
  %99 = vmatprep.subr.mxu0 0.0
  %100 = vmatpush1.msra.mxu0 %v31
  %101 = vmatprep.subr.mxu0 0.0
  %102 = vmatpush1.msra.mxu0 %v32
  %103 = vmatprep.subr.mxu0 0.0
  %104 = vmatpush1.msra.mxu0 %v33
  %105 = vmatprep.subr.mxu0 0.0
  %106 = vmatpush1.msra.mxu0 %v34
  %107 = vmatprep.subr.mxu0 0.0
  %108 = vmatpush1.msra.mxu0 %v35
  %109 = vmatprep.subr.mxu0 0.0
  %110 = vmatpush1.msra.mxu0 %v36
  %111 = vmatprep.subr.mxu0 0.0
  %112 = vmatpush1.msra.mxu0 %v37
  %113 = vmatprep.subr.mxu0 0.0
  %114 = vmatpush1.msra.mxu0 %v38
  %115 = vmatprep.subr.mxu0 0.0
  %116 = vmatpush1.msra.mxu0 %v39
  %117 = vmatprep.subr.mxu0 0.0
  %118 = vmatpush1.msra.mxu0 %v40
  %119 = vmatprep.subr.mxu0 0.0
  %120 = vmatpush1.msra.mxu0 %v41
  %121 = vmatprep.subr.mxu0 0.0
  %122 = vmatpush1.msra.mxu0 %v42
  %123 = vmatprep.subr.mxu0 0.0
  %124 = vmatpush1.msra.mxu0 %v43
  %125 = vmatprep.subr.mxu0 0.0
  %126 = vmatpush1.msra.mxu0 %v44
  %127 = vmatprep.subr.mxu0 0.0
  %128 = vmatpush1.msra.mxu0 %v45
  %129 = vmatprep.subr.mxu0 0.0
  %130 = vmatpush1.msra.mxu0 %v46
  %131 = vmatprep.subr.mxu0 0.0
  %132 = vmatpush1.msra.mxu0 %v47
  %133 = vmatprep.subr.mxu0 0.0
  %134 = vmatpush1.msra.mxu0 %v48
  %135 = vmatprep.subr.mxu0 0.0
  %136 = vmatpush1.msra.mxu0 %v49
  %137 = vmatprep.subr.mxu0 0.0
  %138 = vmatpush1.msra.mxu0 %v50
  %139 = vmatprep.subr.mxu0 0.0
  %140 = vmatpush1.msra.mxu0 %v51
  %141 = vmatprep.subr.mxu0 0.0
  %142 = vmatpush1.msra.mxu0 %v52
  %143 = vmatprep.subr.mxu0 0.0
  %144 = vmatpush1.msra.mxu0 %v53
  %145 = vmatprep.subr.mxu0 0.0
  %146 = vmatpush1.msra.mxu0 %v54
  %147 = vmatprep.subr.mxu0 0.0
  %148 = vmatpush1.msra.mxu0 %v55
  %149 = vmatprep.subr.mxu0 0.0
  %150 = vmatpush1.msra.mxu0 %v56
  %151 = vmatprep.subr.mxu0 0.0
  %152 = vmatpush1.msra.mxu0 %v57
  %153 = vmatprep.subr.mxu0 0.0
  %154 = vmatpush1.msra.mxu0 %v58
  %155 = vmatprep.mubr.f32.mxu0 %v24
  %156 = vmatmul.mubr.f32.gmra.mrb[0].mxu0 %v23
  %v157 = vpop.f32.mrb[0].mxu0
  %v158 = vadd.f32 0.0, %v157
  %v159 = vpop.f32.mrb[0].mxu0
  %160 = vdwg.mxu0
  %161 = vmatprep.subr.mxu0 0.0
  %162 = vmatpush1.msra.mxu0 %v59
  %163 = vmatprep.subr.mxu0 0.0
  %164 = vmatpush1.msra.mxu0 %v60
  %165 = vmatprep.subr.mxu0 0.0
  %166 = vmatpush1.msra.mxu0 %v61
  %167 = vmatprep.subr.mxu0 0.0
  %168 = vmatpush1.msra.mxu0 %v62
  %169 = vmatprep.subr.mxu0 0.0
  %170 = vmatpush1.msra.mxu0 %v63
  %171 = vmatprep.subr.mxu0 0.0
  %172 = vmatpush1.msra.mxu0 %v64
  %173 = vmatprep.subr.mxu0 0.0
  %174 = vmatpush1.msra.mxu0 %v65
  %175 = vmatprep.subr.mxu0 0.0
  %176 = vmatpush1.msra.mxu0 %v66
  %177 = vmatprep.subr.mxu0 0.0
  %178 = vmatpush1.msra.mxu0 %v67
  %179 = vmatprep.subr.mxu0 0.0
  %180 = vmatpush1.msra.mxu0 %v68
  %181 = vmatprep.subr.mxu0 0.0
  %182 = vmatpush1.msra.mxu0 %v69
  %183 = vmatprep.subr.mxu0 0.0
  %184 = vmatpush1.msra.mxu0 %v70
  %185 = vmatprep.subr.mxu0 0.0
  %186 = vmatpush1.msra.mxu0 %v71
  %187 = vmatprep.subr.mxu0 0.0
  %188 = vmatpush1.msra.mxu0 %v72
  %189 = vmatprep.subr.mxu0 0.0
  %190 = vmatpush1.msra.mxu0 %v73
  %191 = vmatprep.subr.mxu0 0.0
  %192 = vmatpush1.msra.mxu0 %v74
  %193 = vmatprep.subr.mxu0 0.0
  %194 = vmatpush1.msra.mxu0 %v75
  %195 = vmatprep.subr.mxu0 0.0
  %196 = vmatpush1.msra.mxu0 %v76
  %197 = vmatprep.subr.mxu0 0.0
  %198 = vmatpush1.msra.mxu0 %v77
  %199 = vmatprep.subr.mxu0 0.0
  %200 = vmatpush1.msra.mxu0 %v78
  %201 = vmatprep.subr.mxu0 0.0
  %202 = vmatpush1.msra.mxu0 %v79
  %203 = vmatprep.subr.mxu0 0.0
  %204 = vmatpush1.msra.mxu0 %v80
  %205 = vmatprep.subr.mxu0 0.0
  %206 = vmatpush1.msra.mxu0 %v81
  %207 = vmatprep.subr.mxu0 0.0
  %208 = vmatpush1.msra.mxu0 %v82
  %209 = vmatprep.subr.mxu0 0.0
  %210 = vmatpush1.msra.mxu0 %v83
  %211 = vmatprep.subr.mxu0 0.0
  %212 = vmatpush1.msra.mxu0 %v84
  %213 = vmatprep.subr.mxu0 0.0
  %214 = vmatpush1.msra.mxu0 %v85
  %215 = vmatprep.subr.mxu0 0.0
  %216 = vmatpush1.msra.mxu0 %v86
  %217 = vmatprep.subr.mxu0 0.0
  %218 = vmatpush1.msra.mxu0 %v87
  %219 = vmatprep.subr.mxu0 0.0
  %220 = vmatpush1.msra.mxu0 %v88
  %221 = vmatprep.subr.mxu0 0.0
  %222 = vmatpush1.msra.mxu0 %v89
  %223 = vmatprep.subr.mxu0 0.0
  %224 = vmatpush1.msra.mxu0 %v90
  %225 = vmatprep.mubr.f32.mxu0 %v26
  %226 = vmatmul.mubr.f32.gmra.mrb[0].mxu0 %v25
  %v227 = vpop.f32.mrb[0].mxu0
  %v228 = vadd.f32 %v158, %v227
  %v229 = vpop.f32.mrb[0].mxu0
  %230 = vdwg.mxu0
  %v231 = vadd.f32 %v22, %v228
  %vm232 = vcmask 7168
  %233 = vst.msk [vmem:[#allocation2] sm:$0xff] %vm232, %v231
  // Predicated region
  $region18: #{tpu_custom_call.1} parent=0 // pred_check
    %p234 = pneg %p16
  $region19: #{tpu_custom_call.1} parent=0 // pred_check_branch
    %236 = sbr.rel (%p234) target = $region21
  $region20: #{tpu_custom_call.1} parent=0 // pred_region
    %v237 = vld [vmem:[#allocation2] sm:$0xff]
    %v238 = vld [vmem:[#allocation3] sm:$0x1]
    %v240 = vlaneseq
    %v241 = vshrl.u32 %v240, 7
    %v242 = vsub.s32 0, %v241
    %v243 = vrot.slane %v238, %v242
    %v245 = vadd.f32 %v237, %v243
    %246 = vst.msk [vmem:[%s3] sm:$0xff] %vm232, %v245
  $region21: #{tpu_custom_call.1} parent=0 // pred_fallthru
    _
  // Predicated region
  $region22: #{tpu_custom_call.1} parent=0 // pred_check
    _
  $region23: #{tpu_custom_call.1} parent=0 // pred_check_branch
    %248 = sbr.rel (0) target = $region25
  $region24: #{tpu_custom_call.1} parent=0 // pred_region
    _
  $region25: #{tpu_custom_call.1} parent=0 // pred_fallthru
    _
  // Predicated region
  $region26: #{tpu_custom_call.1} parent=0 // pred_check
    _
  $region27: #{tpu_custom_call.1} parent=0 // pred_check_branch
    %250 = sbr.rel (0) target = $region29
  $region28: #{tpu_custom_call.1} parent=0 // pred_region
    _
  $region29: #{tpu_custom_call.1} parent=0 // pred_fallthru
    _

</llo_original>
